<compile_context>
chip_gen: v6e
topology: v6e:2x2x1
jax: 0.10.0
libtpu: 0.0.40
codegen_flags: <defaults>
</compile_context>

<pallas_src>
import jax
import jax.numpy as jnp
from jax.experimental import pallas as pl
from jax.experimental.pallas import tpu as pltpu


def _round_up(n, m):
    return (n + m - 1) // m * m


def _vmem_limit_bytes():
    """Generation-aware VMEM request: capacity - 16 MiB headroom, capped at 64 MiB."""
    try:
        cap = int(pltpu.get_tpu_info().vmem_capacity_bytes)
    except Exception:
        cap = 64 * 1024 * 1024  # conservative fallback (safe on every generation)
    return int(min(64 * 1024 * 1024, max(32 * 1024 * 1024, cap - 16 * 1024 * 1024)))


def _choose_row_tiling(n_rows, tile_m, min_steps):
    """Pick (tm, steps, padded_rows): tm multiple of 16, >=min_steps steps when possible."""
    padded16 = max(16, _round_up(n_rows, 16))
    steps = pl.cdiv(padded16, max(16, tile_m))
    if padded16 >= min_steps * 16:
        steps = max(steps, min_steps)          # let v7x split the row axis across TCs
    tm = _round_up(pl.cdiv(padded16, steps), 16)
    steps = pl.cdiv(padded16, tm)
    return tm, steps, tm * steps


# -----------------------------------------------------------------------------
# Kernel A: weights whole-resident in VMEM (small/medium d_out).
# gamma/beta are pre-folded into W1/b1 (see pack_connector_params).
# -----------------------------------------------------------------------------
def _connector_kernel(x_ref, w1_ref, b1_ref, w2_ref, b2_ref, o_ref):
    x = x_ref[...].astype(jnp.float32)

    # LayerNorm over features (torch default eps=1e-5), f32, two-pass centered.
    mean = jnp.mean(x, axis=-1, keepdims=True)
    xc = x - mean
    var = jnp.mean(xc * xc, axis=-1, keepdims=True)
    xn = xc * jax.lax.rsqrt(var + 1e-5)

    # Linear(d_in, d_out) + SiLU; bf16 MXU operands, f32 accumulation.
    h = jnp.dot(xn.astype(w1_ref.dtype), w1_ref[...],
                preferred_element_type=jnp.float32) + b1_ref[...]
    h = h * jax.nn.sigmoid(h)

    # Linear(d_out, d_out).
    y = jnp.dot(h.astype(w2_ref.dtype), w2_ref[...],
                preferred_element_type=jnp.float32) + b2_ref[...]
    o_ref[...] = y.astype(o_ref.dtype)


# -----------------------------------------------------------------------------
# Kernel B: W2 streamed over output columns (large d_out / v7x VMEM budget).
# h is computed once per row tile (j == 0) and reused across column blocks.
# -----------------------------------------------------------------------------
def _connector_kernel_stream_n(x_ref, w1_ref, b1_ref, w2_ref, b2_ref, o_ref, h_ref):
    @pl.when(pl.program_id(1) == 0)
    def _():
        x = x_ref[...].astype(jnp.float32)
        mean = jnp.mean(x, axis=-1, keepdims=True)
        xc = x - mean
        var = jnp.mean(xc * xc, axis=-1, keepdims=True)
        xn = xc * jax.lax.rsqrt(var + 1e-5)
        h = jnp.dot(xn.astype(w1_ref.dtype), w1_ref[...],
                    preferred_element_type=jnp.float32) + b1_ref[...]
        h = h * jax.nn.sigmoid(h)
        h_ref[...] = h.astype(h_ref.dtype)        # bf16 scratch == MXU operand dtype

    y = jnp.dot(h_ref[...], w2_ref[...],
                preferred_element_type=jnp.float32) + b2_ref[...]
    o_ref[...] = y.astype(o_ref.dtype)


def connector_forward(x, packed, *, tile_m=None, tile_n=512,
                      out_dtype=jnp.bfloat16, min_row_steps=2, stream_n=None):
    """x: (B, S, d_in) f32 or bf16 -> (B, S, d_out) `out_dtype` via Pallas kernel."""
    B, S, d_in = x.shape
    d_out = packed["w1"].shape[1]
    n_rows = B * S
    x2d = x.reshape(n_rows, d_in)                 # no forced dtype cast of activations

    vmem_limit = _vmem_limit_bytes()
    if tile_m is None:
        tile_m = 256 if vmem_limit < 56 * 1024 * 1024 else 512
    tm, steps, padded = _choose_row_tiling(n_rows, tile_m, min_row_steps)
    if padded != n_rows:
        # Only for ragged row counts (never in the demo); zero rows LN cleanly.
        x2d = jnp.pad(x2d, ((0, padded - n_rows), (0, 0)))

    w2_bytes = d_out * d_out * jnp.dtype(packed["w2"].dtype).itemsize
    if stream_n is None:
        stream_n = w2_bytes > vmem_limit // 4     # production d_out -> stream W2 columns

    cost = pl.CostEstimate(
        flops=int(2 * padded * (d_in * d_out + d_out * d_out)),
        transcendentals=int(padded * d_out),
        bytes_accessed=int(
            x2d.size * jnp.dtype(x2d.dtype).itemsize
            + sum(int(packed[k].size) * jnp.dtype(packed[k].dtype).itemsize
                  for k in ("w1", "b1", "w2", "b2"))
            + padded * d_out * jnp.dtype(out_dtype).itemsize),
    )

    # Whole-array, single-buffered VMEM residency (no double-buffer for constants).
    resident = pl.BlockSpec(memory_space=pltpu.MemorySpace.VMEM)

    if not stream_n:
        out2d = pl.pallas_call(
            _connector_kernel,
            out_shape=jax.ShapeDtypeStruct((padded, d_out), out_dtype),
            grid=(steps,),
            in_specs=[
                pl.BlockSpec((tm, d_in), lambda i: (i, 0)),   # x tile (pipelined)
                resident,                                     # W1 (in,out) bf16
                resident,                                     # b1 f32
                resident,                                     # W2 (in,out) bf16
                resident,                                     # b2 f32
            ],
            out_specs=pl.BlockSpec((tm, d_out), lambda i: (i, 0)),
            compiler_params=pltpu.CompilerParams(
                dimension_semantics=("parallel",),
                vmem_limit_bytes=vmem_limit),
            cost_estimate=cost,
        )(x2d, packed["w1"], packed["b1"], packed["w2"], packed["b2"])
    else:
        tn = min(tile_n, d_out)
        tn = max(128, _round_up(tn, 128))
        if d_out % tn != 0:
            tn = d_out
        n_steps = d_out // tn
        out2d = pl.pallas_call(
            _connector_kernel_stream_n,
            out_shape=jax.ShapeDtypeStruct((padded, d_out), out_dtype),
            grid=(steps, n_steps),
            in_specs=[
                pl.BlockSpec((tm, d_in), lambda i, j: (i, 0)),   # x tile
                resident,                                        # W1 resident
                resident,                                        # b1 resident
                pl.BlockSpec((d_out, tn), lambda i, j: (0, j)),  # W2 column block
                pl.BlockSpec((1, tn), lambda i, j: (0, j)),      # b2 column block
            ],
            out_specs=pl.BlockSpec((tm, tn), lambda i, j: (i, j)),
            scratch_shapes=[pltpu.VMEM((tm, d_out), packed["w2"].dtype)],  # h (bf16)
            compiler_params=pltpu.CompilerParams(
                dimension_semantics=("parallel", "arbitrary"),
                vmem_limit_bytes=vmem_limit),
            cost_estimate=cost,
        )(x2d, packed["w1"], packed["b1"], packed["w2"], packed["b2"])

    return out2d[:n_rows].reshape(B, S, d_out)


# -----------------------------------------------------------------------------
# Parameter init (torch-default semantics) + kernel-ready packing.
# -----------------------------------------------------------------------------
def init_connector_params(key, d_in, d_out):
    k1, k2, k3, k4 = jax.random.split(key, 4)
    lim1 = 1.0 / jnp.sqrt(d_in)
    lim2 = 1.0 / jnp.sqrt(d_out)
    return {
        "ln_g": jnp.ones((d_in,), jnp.float32),
        "ln_b": jnp.zeros((d_in,), jnp.float32),
        # stored as (in, out) = torch weight (out, in) transposed
        "w1": jax.random.uniform(k1, (d_in, d_out), jnp.float32, -lim1, lim1),
        "b1": jax.random.uniform(k2, (d_out,), jnp.float32, -lim1, lim1),
        "w2": jax.random.uniform(k3, (d_out, d_out), jnp.float32, -lim2, lim2),
        "b2": jax.random.uniform(k4, (d_out,), jnp.float32, -lim2, lim2),
    }


def pack_connector_params(p, *, mxu_dtype=jnp.bfloat16):
    """Fold LN affine into the first linear and cast MXU operands to bf16.

    (xn*g + b) @ W1 + b1  ==  xn @ (diag(g) @ W1) + (b @ W1 + b1)
    """
    g = p["ln_g"].astype(jnp.float32)
    b = p["ln_b"].astype(jnp.float32)
    w1 = p["w1"].astype(jnp.float32)
    w2 = p["w2"].astype(jnp.float32)
    w1_eff = w1 * g[:, None]
    b1_eff = b @ w1 + p["b1"].astype(jnp.float32)
    d_out = w1.shape[1]
    return {
        "w1": w1_eff.astype(mxu_dtype),
        "b1": b1_eff.reshape(1, d_out),
        "w2": w2.astype(mxu_dtype),
        "b2": p["b2"].astype(jnp.float32).reshape(1, d_out),
    }


# -----------------------------------------------------------------------------
# Pure-JAX references for correctness checking.
# -----------------------------------------------------------------------------
def connector_reference(x, p):
    """Exact f32 reference of Connector.forward (torch semantics)."""
    mean = jnp.mean(x, axis=-1, keepdims=True)
    var = jnp.mean((x - mean) ** 2, axis=-1, keepdims=True)
    xn = (x - mean) * jax.lax.rsqrt(var + 1e-5) * p["ln_g"] + p["ln_b"]
    h = xn @ p["w1"] + p["b1"]
    h = h * jax.nn.sigmoid(h)
    return h @ p["w2"] + p["b2"]


def connector_reference_emulated(x, packed, out_dtype=jnp.bfloat16):
    """Reference that applies the same bf16 casts as the kernel."""
    x = x.astype(jnp.float32)
    mean = jnp.mean(x, axis=-1, keepdims=True)
    xc = x - mean
    var = jnp.mean(xc * xc, axis=-1, keepdims=True)
    xn = xc * jax.lax.rsqrt(var + 1e-5)
    w1 = packed["w1"].astype(jnp.float32)
    w2 = packed["w2"].astype(jnp.float32)
    h = xn.astype(packed["w1"].dtype).astype(jnp.float32) @ w1 + packed["b1"]
    h = h * jax.nn.sigmoid(h)
    y = h.astype(packed["w2"].dtype).astype(jnp.float32) @ w2 + packed["b2"]
    return y.astype(out_dtype)


# -----------------------------------------------------------------------------
# prepare_inputs glue (embedding lookup + concat + attention mask), plain JAX.
# -----------------------------------------------------------------------------
def prepare_inputs(vision_embeds, input_ids, attention_mask, embed_table,
                   bos_ids, img_token, end_img_token, connector_packed):
    bsz = vision_embeds.shape[0]
    d_txt = embed_table.shape[1]
    # Connector on vision features — Pallas kernel hot path.
    vis = connector_forward(vision_embeds, connector_packed,
                            out_dtype=embed_table.dtype)        # (B, S_vis, d_txt)
    vis_len = vis.shape[1]
    bos_len = len(bos_ids)

    embed = lambda ids: jnp.take(embed_table, ids, axis=0)
    bos_embeds = jnp.broadcast_to(embed(jnp.asarray(bos_ids)),
                                  (bsz, bos_len, d_txt))
    img_embeds = jnp.broadcast_to(embed(jnp.asarray([img_token])),
                                  (bsz, 1, d_txt))
    end_img_embeds = jnp.broadcast_to(embed(jnp.asarray([end_img_token])),
                                      (bsz, 1, d_txt))
    text_embeds = embed(input_ids)                               # (B, T, d_txt)

    inputs_embeds = jnp.concatenate(
        (bos_embeds, img_embeds, vis, end_img_embeds, text_embeds[:, bos_len:, :]),
        axis=1,
    )
    additional_len = 2
    attention_mask = jnp.concatenate(
        (jnp.ones((bsz, vis_len + additional_len), attention_mask.dtype),
         attention_mask),
        axis=1,
    )
    # TODO(synk): the downstream HuggingFace causal LLM forward (self.llm(...))
    # and the frozen vision tower are external pretrained models, not reproduced.
    return inputs_embeds, attention_mask


# -----------------------------------------------------------------------------
if __name__ == "__main__":
    key = jax.random.PRNGKey(0)
    k_vis, k_par, k_emb, k_ids = jax.random.split(key, 4)

    # Small shapes consistent with the module:
    B = 2            # batch
    S_VIS = 16       # vision tokens per image (output of frozen vision tower)
    D_VIS = 64       # vision_config.hidden_size
    D_TXT = 256      # text_config.hidden_size
    T_TXT = 8        # text sequence length
    VOCAB = 256

    # Synthetic "vision tower output" (the real tower is a frozen HF model).
    vision_embeds = jax.random.normal(k_vis, (B, S_VIS, D_VIS), jnp.float32)

    params = init_connector_params(k_par, D_VIS, D_TXT)
    packed = pack_connector_params(params)

    # Synthetic LLM token-embedding table and text inputs.
    embed_table = jax.random.normal(k_emb, (VOCAB, D_TXT), jnp.float32) * 0.02
    input_ids = jax.random.randint(k_ids, (B, T_TXT), 0, VOCAB)
    attention_mask = jnp.ones((B, T_TXT), jnp.float32)
    bos_ids = [1, 2, 3]          # tokenized config.bos_token
    img_token, end_img_token = 10, 11

    # Run the Pallas connector + glue.
    inputs_embeds, attn = prepare_inputs(
        vision_embeds, input_ids, attention_mask, embed_table,
        bos_ids, img_token, end_img_token, packed,
    )
    jax.block_until_ready(inputs_embeds)
    jax.block_until_ready(attn)

    # Exercise both kernel variants and compare against references.
    got = connector_forward(vision_embeds, packed)                         # resident W2
    got_stream = connector_forward(vision_embeds, packed,
                                   stream_n=True, tile_n=128)              # streamed W2
    jax.block_until_ready(got)
    jax.block_until_ready(got_stream)

    want_bf = connector_reference_emulated(vision_embeds, packed).astype(jnp.float32)
    want_f32 = connector_reference(vision_embeds, params)

    for name, y in (("resident", got), ("stream_n", got_stream)):
        assert y.shape == (B, S_VIS, D_TXT), name
        assert y.dtype == jnp.bfloat16, name
        y32 = y.astype(jnp.float32)
        assert jnp.allclose(y32, want_bf, atol=1e-2, rtol=1e-2), f"{name}: bf16 ref mismatch"
        assert jnp.allclose(y32, want_f32, atol=6e-2, rtol=6e-2), f"{name}: f32 ref mismatch"

    # Shape sanity vs. torch semantics of prepare_inputs.
    expected_seq = len(bos_ids) + 1 + S_VIS + 1 + (T_TXT - len(bos_ids))
    assert inputs_embeds.shape == (B, expected_seq, D_TXT)
    assert attn.shape == (B, S_VIS + 2 + T_TXT)

    print("KERNEL_OK")
</pallas_src>

<mosaic_0001>
module attributes {stable_mosaic.version = 11 : i64} {
  func.func @_connector_kernel(%arg0: i32, %arg1: memref<16x64xf32, #tpu.memory_space<vmem>>, %arg2: memref<64x256xbf16, #tpu.memory_space<vmem>>, %arg3: memref<1x256xf32, #tpu.memory_space<vmem>>, %arg4: memref<256x256xbf16, #tpu.memory_space<vmem>>, %arg5: memref<1x256xf32, #tpu.memory_space<vmem>>, %arg6: memref<16x256xf32, #tpu.memory_space<vmem>>) attributes {dimension_semantics = [#tpu.dimension_semantics<parallel>], iteration_bounds = array<i64: 2>, scalar_prefetch = 0 : i64, scratch_operands = 0 : i64, tpu.core_type = #tpu.core_type<tc>, window_params = [{transform_indices = @transform_0, window_bounds = array<i64: 16, 64>}, {pipeline_mode = #tpu.pipeline_mode<synchronous>, transform_indices = @transform_1, window_bounds = array<i64: 64, 256>}, {pipeline_mode = #tpu.pipeline_mode<synchronous>, transform_indices = @transform_2, window_bounds = array<i64: 1, 256>}, {pipeline_mode = #tpu.pipeline_mode<synchronous>, transform_indices = @transform_3, window_bounds = array<i64: 256, 256>}, {pipeline_mode = #tpu.pipeline_mode<synchronous>, transform_indices = @transform_4, window_bounds = array<i64: 1, 256>}, {transform_indices = @transform_5, window_bounds = array<i64: 16, 256>}]} {
    %c0 = arith.constant 0 : index
    %c0_0 = arith.constant 0 : index
    %0 = vector.load %arg1[%c0, %c0_0] : memref<16x64xf32, #tpu.memory_space<vmem>>, vector<16x64xf32>
    %cst = arith.constant dense<0.000000e+00> : vector<16xf32>
    %1 = vector.multi_reduction <add>, %0, %cst [1] : vector<16x64xf32> to vector<16xf32>
    %2 = vector.shape_cast %1 : vector<16xf32> to vector<16x1xf32>
    %cst_1 = arith.constant 6.400000e+01 : f32
    %3 = vector.broadcast %cst_1 : f32 to vector<16x1xf32>
    %4 = arith.divf %2, %3 : vector<16x1xf32>
    %5 = vector.broadcast %4 : vector<16x1xf32> to vector<16x64xf32>
    %6 = arith.subf %0, %5 : vector<16x64xf32>
    %7 = arith.mulf %6, %6 : vector<16x64xf32>
    %cst_2 = arith.constant dense<0.000000e+00> : vector<16xf32>
    %8 = vector.multi_reduction <add>, %7, %cst_2 [1] : vector<16x64xf32> to vector<16xf32>
    %9 = vector.shape_cast %8 : vector<16xf32> to vector<16x1xf32>
    %cst_3 = arith.constant 6.400000e+01 : f32
    %10 = vector.broadcast %cst_3 : f32 to vector<16x1xf32>
    %11 = arith.divf %9, %10 : vector<16x1xf32>
    %cst_4 = arith.constant 9.99999974E-6 : f32
    %12 = vector.broadcast %cst_4 : f32 to vector<16x1xf32>
    %13 = arith.addf %11, %12 : vector<16x1xf32>
    %14 = math.rsqrt %13 : vector<16x1xf32>
    %15 = vector.broadcast %14 : vector<16x1xf32> to vector<16x64xf32>
    %16 = arith.mulf %6, %15 : vector<16x64xf32>
    %17 = arith.truncf %16 : vector<16x64xf32> to vector<16x64xbf16>
    %c0_5 = arith.constant 0 : index
    %c0_6 = arith.constant 0 : index
    %18 = vector.load %arg2[%c0_5, %c0_6] : memref<64x256xbf16, #tpu.memory_space<vmem>>, vector<64x256xbf16>
    %cst_7 = arith.constant dense<0.000000e+00> : vector<16x256xf32>
    %19 = tpu.matmul %17, %18, %cst_7 {dimension_numbers = #tpu.dot_dimension_numbers<[1], [0], [0], [1], [0, 0, 1, 1], [], []>} : vector<16x64xbf16>, vector<64x256xbf16>, vector<16x256xf32> -> vector<16x256xf32>
    %c0_8 = arith.constant 0 : index
    %c0_9 = arith.constant 0 : index
    %20 = vector.load %arg3[%c0_8, %c0_9] : memref<1x256xf32, #tpu.memory_space<vmem>>, vector<1x256xf32>
    %21 = vector.broadcast %20 : vector<1x256xf32> to vector<16x256xf32>
    %22 = arith.addf %19, %21 : vector<16x256xf32>
    %23 = arith.negf %22 : vector<16x256xf32>
    %24 = math.exp %23 : vector<16x256xf32>
    %cst_10 = arith.constant 1.000000e+00 : f32
    %25 = vector.broadcast %cst_10 : f32 to vector<16x256xf32>
    %26 = arith.addf %25, %24 : vector<16x256xf32>
    %27 = arith.divf %25, %26 : vector<16x256xf32>
    %28 = arith.mulf %22, %27 : vector<16x256xf32>
    %29 = arith.truncf %28 : vector<16x256xf32> to vector<16x256xbf16>
    %c0_11 = arith.constant 0 : index
    %c0_12 = arith.constant 0 : index
    %30 = vector.load %arg4[%c0_11, %c0_12] : memref<256x256xbf16, #tpu.memory_space<vmem>>, vector<256x256xbf16>
    %cst_13 = arith.constant dense<0.000000e+00> : vector<16x256xf32>
    %31 = tpu.matmul %29, %30, %cst_13 {dimension_numbers = #tpu.dot_dimension_numbers<[1], [0], [0], [1], [0, 0, 1, 1], [], []>} : vector<16x256xbf16>, vector<256x256xbf16>, vector<16x256xf32> -> vector<16x256xf32>
    %c0_14 = arith.constant 0 : index
    %c0_15 = arith.constant 0 : index
    %32 = vector.load %arg5[%c0_14, %c0_15] : memref<1x256xf32, #tpu.memory_space<vmem>>, vector<1x256xf32>
    %33 = vector.broadcast %32 : vector<1x256xf32> to vector<16x256xf32>
    %34 = arith.addf %31, %33 : vector<16x256xf32>
    %c0_16 = arith.constant 0 : index
    %c0_17 = arith.constant 0 : index
    %35 = vector.load %arg6[%c0_16, %c0_17] : memref<16x256xf32, #tpu.memory_space<vmem>>, vector<16x256xf32>
    tpu.vector_store %arg6[%c0_16, %c0_17], %34 {strides = array<i32>} : memref<16x256xf32, #tpu.memory_space<vmem>>, vector<16x256xf32>,
    return
  }
  func.func @transform_0(%arg0: i32) -> (i32, i32) {
    %c0_i32 = arith.constant 0 : i32
    %c0_i32_0 = arith.constant 0 : i32
    return %arg0, %c0_i32 : i32, i32
  }
  func.func @transform_1(%arg0: i32) -> (i32, i32) {
    %c0_i32 = arith.constant 0 : i32
    %c0_i32_0 = arith.constant 0 : i32
    %c0_i32_1 = arith.constant 0 : i32
    return %c0_i32, %c0_i32_0 : i32, i32
  }
  func.func @transform_2(%arg0: i32) -> (i32, i32) {
    %c0_i32 = arith.constant 0 : i32
    %c0_i32_0 = arith.constant 0 : i32
    %c0_i32_1 = arith.constant 0 : i32
    return %c0_i32, %c0_i32_0 : i32, i32
  }
  func.func @transform_3(%arg0: i32) -> (i32, i32) {
    %c0_i32 = arith.constant 0 : i32
    %c0_i32_0 = arith.constant 0 : i32
    %c0_i32_1 = arith.constant 0 : i32
    return %c0_i32, %c0_i32_0 : i32, i32
  }
  func.func @transform_4(%arg0: i32) -> (i32, i32) {
    %c0_i32 = arith.constant 0 : i32
    %c0_i32_0 = arith.constant 0 : i32
    %c0_i32_1 = arith.constant 0 : i32
    return %c0_i32, %c0_i32_0 : i32, i32
  }
  func.func @transform_5(%arg0: i32) -> (i32, i32) {
    %c0_i32 = arith.constant 0 : i32
    %c0_i32_0 = arith.constant 0 : i32
    return %arg0, %c0_i32 : i32, i32
  }
}

</mosaic_0001>

<llo_original>
// kernel: tpu_custom_call.1
$region0: #{tpu_custom_call.1}
  #allocation0 [shape = 'u32[]', space=smem, size = 0x4, offset = 0x4, fixed_abs, tag = 'smem constant byte address 0x4 - core index']
  #allocation1 [shape = 'u32[144,128]{1,0:T(1,128)}', space=vmem, size = 0x12000, scoped, tag = 'internal scratch']
  %s0 = inlined_call_operand.hbm [shape: f32[32,64], index: 0, kind: input, shape index: {}]
  %s1 = inlined_call_operand.hbm [shape: bf16[64,256], index: 1, kind: input, shape index: {}]
  %s2 = inlined_call_operand.vmem [shape: f32[1,256], index: 2, kind: input, shape index: {}]
  %s3 = inlined_call_operand.hbm [shape: bf16[256,256], index: 3, kind: input, shape index: {}]
  %s4 = inlined_call_operand.vmem [shape: f32[1,256], index: 4, kind: input, shape index: {}]
  %s5 = inlined_call_operand.hbm [shape: f32[32,256], index: 5, kind: output, shape index: {}]
  %s6 = sld [smem:[#allocation0]]
  $region65: #{tpu_custom_call.1} parent=0
    _
  %s8 = ssub.s32 1, %s6
  %s9 = scalar_select 0, %s8, %s6
  $region1: #{tpu_custom_call.1} parent=0
    #allocation2 [shape = 'u8[16384]{0}', space=vmem, size = 0x4000, scoped, tag = 'input window, operand 0']
    #allocation3 [shape = 's32[2]{0}', space=sflag, size = 0x8, scoped, tag = 'scoped memory for tpu_custom_call.1']
    #allocation4 [shape = 's32[2]{0}', space=sflag, size = 0x8, scoped, tag = 'scoped memory for tpu_custom_call.1']
    #allocation5 [shape = 'u8[32768]{0}', space=vmem, size = 0x8000, scoped, tag = 'input window, operand 1, single buffered']
    #allocation6 [shape = 's32[1]{0}', space=sflag, size = 0x4, scoped, tag = 'scoped memory for tpu_custom_call.1']
    #allocation7 [shape = 'u8[131072]{0}', space=vmem, size = 0x20000, scoped, tag = 'input window, operand 3, single buffered']
    #allocation8 [shape = 'u8[32768]{0}', space=vmem, size = 0x8000, scoped, tag = 'output window, operand 0']
    %10 = vsyncpa [#allocation3], 0
    %s11 = scalar_lea.sflag [#allocation3], 1
    %12 = vsyncpa %s11, 0
    %13 = vsyncpa [#allocation6], 0
    %14 = vsyncpa [#allocation4], 0
    %s15 = scalar_lea.sflag [#allocation4], 1
    %16 = vsyncpa %s15, 0
    loop: start=0, step=1, limit=4
    $region2: #{tpu_custom_call.1} parent=1 // loop_pre_header
      _
    $region3: #{tpu_custom_call.1} parent=1 // loop_header
      %s18 = sphi 0, %s22
      %p19 = scmp.ge.s32.totalorder %s18, 4
      %s28 = sphi 0, %s30
      %s31 = sphi 0, %s28
      %s32 = sphi 0, %s31
      %s48 = sphi 0, %s32
      %s52 = sphi 0, %s52
      %s54 = sphi 0, %s52
      %s55 = sphi 0, %s54
      %s69 = sphi 0, %s55
      %s73 = sphi 0, %s73
      %s75 = sphi 0, %s73
      %s76 = sphi 0, %s75
      %s90 = sphi 0, %s76
      %s94 = sphi 0, %s94
      %s96 = sphi 0, %s94
      %s97 = sphi 0, %s96
      %s111 = sphi 0, %s97
      %s115 = sphi 0, %s115
      %s117 = sphi 0, %s115
      %s118 = sphi 0, %s117
      %s132 = sphi 0, %s118
      %s138 = sphi 0, %s140
      %s141 = sphi 0, %s138
      %s142 = sphi 0, %s141
      %s158 = sphi 0, %s142
    $region4: #{tpu_custom_call.1} parent=1 // loop_header_branch
      %21 = sbr.rel (%p19) target = $region8
    $region5: #{tpu_custom_call.1} parent=1 // loop_body
      %s23 = ssub.s32 %s18, 1
      %s24 = ssub.s32 %s18, 2
      %s25 = sadd.s32 %s18, 1
      %s26 = ssub.s32 %s18, %s25
      %p27 = scmp.eq.s32.totalorder %s26, 0
      %s29 = sadd.s32 %s28, 1
      %s30 = scalar_select %p27, %s28, %s29
      %p33 = pneg %p27
      %p34 = scmp.eq.s32.totalorder %s18, 1
      %p35 = por %p33, %p34
      %p36 = scmp.ne.s32.totalorder %s28, %s31
      %p37 = scmp.eq.s32.totalorder %s18, 0
      %p38 = por %p36, %p37
      %p39 = scmp.ne.s32.totalorder %s28, %s31
      %p40 = scmp.eq.s32.totalorder %s23, 1
      %p41 = por %p39, %p40
      %p42 = scmp.ne.s32.totalorder %s31, %s32
      %p43 = scmp.eq.s32.totalorder %s23, 0
      %p44 = por %p42, %p43
      %p45 = scmp.ne.s32.totalorder %s31, %s32
      %p46 = scmp.eq.s32.totalorder %s24, 1
      %p47 = por %p45, %p46
      %p49 = scmp.ne.s32.totalorder %s32, %s48
      %p50 = scmp.eq.s32.totalorder %s24, 0
      %p51 = por %p49, %p50
      %s53 = sadd.s32 %s52, 1
      %p56 = scmp.eq.s32.totalorder %s18, 1
      %p57 = scmp.ne.s32.totalorder %s52, %s54
      %p58 = scmp.eq.s32.totalorder %s18, 0
      %p59 = por %p57, %p58
      %p60 = scmp.ne.s32.totalorder %s52, %s54
      %p61 = scmp.eq.s32.totalorder %s23, 1
      %p62 = por %p60, %p61
      %p63 = scmp.ne.s32.totalorder %s54, %s55
      %p64 = scmp.eq.s32.totalorder %s23, 0
      %p65 = por %p63, %p64
      %p66 = scmp.ne.s32.totalorder %s54, %s55
      %p67 = scmp.eq.s32.totalorder %s24, 1
      %p68 = por %p66, %p67
      %p70 = scmp.ne.s32.totalorder %s55, %s69
      %p71 = scmp.eq.s32.totalorder %s24, 0
      %p72 = por %p70, %p71
      %s74 = sadd.s32 %s73, 1
      %p77 = scmp.eq.s32.totalorder %s18, 1
      %p78 = scmp.ne.s32.totalorder %s73, %s75
      %p79 = scmp.eq.s32.totalorder %s18, 0
      %p80 = por %p78, %p79
      %p81 = scmp.ne.s32.totalorder %s73, %s75
      %p82 = scmp.eq.s32.totalorder %s23, 1
      %p83 = por %p81, %p82
      %p84 = scmp.ne.s32.totalorder %s75, %s76
      %p85 = scmp.eq.s32.totalorder %s23, 0
      %p86 = por %p84, %p85
      %p87 = scmp.ne.s32.totalorder %s75, %s76
      %p88 = scmp.eq.s32.totalorder %s24, 1
      %p89 = por %p87, %p88
      %p91 = scmp.ne.s32.totalorder %s76, %s90
      %p92 = scmp.eq.s32.totalorder %s24, 0
      %p93 = por %p91, %p92
      %s95 = sadd.s32 %s94, 1
      %p98 = scmp.eq.s32.totalorder %s18, 1
      %p99 = scmp.ne.s32.totalorder %s94, %s96
      %p100 = scmp.eq.s32.totalorder %s18, 0
      %p101 = por %p99, %p100
      %p102 = scmp.ne.s32.totalorder %s94, %s96
      %p103 = scmp.eq.s32.totalorder %s23, 1
      %p104 = por %p102, %p103
      %p105 = scmp.ne.s32.totalorder %s96, %s97
      %p106 = scmp.eq.s32.totalorder %s23, 0
      %p107 = por %p105, %p106
      %p108 = scmp.ne.s32.totalorder %s96, %s97
      %p109 = scmp.eq.s32.totalorder %s24, 1
      %p110 = por %p108, %p109
      %p112 = scmp.ne.s32.totalorder %s97, %s111
      %p113 = scmp.eq.s32.totalorder %s24, 0
      %p114 = por %p112, %p113
      %s116 = sadd.s32 %s115, 1
      %p119 = scmp.eq.s32.totalorder %s18, 1
      %p120 = scmp.ne.s32.totalorder %s115, %s117
      %p121 = scmp.eq.s32.totalorder %s18, 0
      %p122 = por %p120, %p121
      %p123 = scmp.ne.s32.totalorder %s115, %s117
      %p124 = scmp.eq.s32.totalorder %s23, 1
      %p125 = por %p123, %p124
      %p126 = scmp.ne.s32.totalorder %s117, %s118
      %p127 = scmp.eq.s32.totalorder %s23, 0
      %p128 = por %p126, %p127
      %p129 = scmp.ne.s32.totalorder %s117, %s118
      %p130 = scmp.eq.s32.totalorder %s24, 1
      %p131 = por %p129, %p130
      %p133 = scmp.ne.s32.totalorder %s118, %s132
      %p134 = scmp.eq.s32.totalorder %s24, 0
      %p135 = por %p133, %p134
      %s136 = ssub.s32 %s18, %s25
      %p137 = scmp.eq.s32.totalorder %s136, 0
      %s139 = sadd.s32 %s138, 1
      %s140 = scalar_select %p137, %s138, %s139
      %p143 = pneg %p137
      %p144 = scmp.eq.s32.totalorder %s18, 1
      %p145 = por %p143, %p144
      %p146 = scmp.ne.s32.totalorder %s138, %s141
      %p147 = scmp.eq.s32.totalorder %s18, 0
      %p148 = por %p146, %p147
      %p149 = scmp.ne.s32.totalorder %s138, %s141
      %p150 = scmp.eq.s32.totalorder %s23, 1
      %p151 = por %p149, %p150
      %p152 = scmp.ne.s32.totalorder %s141, %s142
      %p153 = scmp.eq.s32.totalorder %s23, 0
      %p154 = por %p152, %p153
      %p155 = scmp.ne.s32.totalorder %s141, %s142
      %p156 = scmp.eq.s32.totalorder %s24, 1
      %p157 = por %p155, %p156
      %p159 = scmp.ne.s32.totalorder %s142, %s158
      %p160 = scmp.eq.s32.totalorder %s24, 0
      %p161 = por %p159, %p160
      %p162 = scmp.le.s32.totalorder 1, %s18
      %p163 = scmp.lt.s32.totalorder %s18, 3
      %p164 = pnand %p162, %p163
      %p165 = pneg %p164
      // Predicated region
      $region9: #{tpu_custom_call.1} parent=5 // pred_check
        _
      $region10: #{tpu_custom_call.1} parent=5 // pred_check_branch
        %167 = sbr.rel (%p164) target = $region12
      $region11: #{tpu_custom_call.1} parent=5 // pred_region
        %s168 = ssub.s32 %s18, 1
        // Predicated region
        $region13: #{tpu_custom_call.1} parent=11 // pred_check
          %p169 = pneg %p65
        $region14: #{tpu_custom_call.1} parent=11 // pred_check_branch
          %171 = sbr.rel (%p169) target = $region16
        $region15: #{tpu_custom_call.1} parent=11 // pred_region
          %s173 = ssub.s32 1024, 1024
          %174 = vsyncadd [#allocation6], %s173
          %s175 = sshll.u32 [#allocation5], 4
          %s176 = int_to_ptr.vmem [resolvable:$true] %s175
          %181 = dma.hbm_to_vmem [thread:$0]  %s1, 1024, %s176, [#allocation6], 128, 128, 8
        $region16: #{tpu_custom_call.1} parent=11 // pred_fallthru
          _
        // Predicated region
        $region17: #{tpu_custom_call.1} parent=11 // pred_check
          %p182 = pneg %p86
        $region18: #{tpu_custom_call.1} parent=11 // pred_check_branch
          %184 = sbr.rel (%p182) target = $region20
        $region19: #{tpu_custom_call.1} parent=11 // pred_region
          _
        $region20: #{tpu_custom_call.1} parent=11 // pred_fallthru
          _
        // Predicated region
        $region21: #{tpu_custom_call.1} parent=11 // pred_check
          %p185 = pneg %p107
        $region22: #{tpu_custom_call.1} parent=11 // pred_check_branch
          %187 = sbr.rel (%p185) target = $region24
        $region23: #{tpu_custom_call.1} parent=11 // pred_region
          %s189 = ssub.s32 4096, 4096
          %190 = vsyncadd [#allocation6], %s189
          %s191 = sshll.u32 [#allocation7], 4
          %s192 = int_to_ptr.vmem [resolvable:$true] %s191
          %197 = dma.hbm_to_vmem [thread:$0]  %s3, 4096, %s192, [#allocation6], 128, 128, 8
        $region24: #{tpu_custom_call.1} parent=11 // pred_fallthru
          _
        // Predicated region
        $region25: #{tpu_custom_call.1} parent=11 // pred_check
          %p198 = pneg %p128
        $region26: #{tpu_custom_call.1} parent=11 // pred_check_branch
          %200 = sbr.rel (%p198) target = $region28
        $region27: #{tpu_custom_call.1} parent=11 // pred_region
          _
        $region28: #{tpu_custom_call.1} parent=11 // pred_fallthru
          _
      $region12: #{tpu_custom_call.1} parent=5 // pred_fallthru
        _
      %p201 = scmp.lt.s32.totalorder %s18, 2
      // Predicated region
      $region29: #{tpu_custom_call.1} parent=5 // pred_check
        %p202 = pneg %p201
      $region30: #{tpu_custom_call.1} parent=5 // pred_check_branch
        %204 = sbr.rel (%p202) target = $region32
      $region31: #{tpu_custom_call.1} parent=5 // pred_region
        // Predicated region
        $region33: #{tpu_custom_call.1} parent=31 // pred_check
          %p205 = pneg %p38
        $region34: #{tpu_custom_call.1} parent=31 // pred_check_branch
          %207 = sbr.rel (%p205) target = $region36
        $region35: #{tpu_custom_call.1} parent=31 // pred_region
          %s208 = sand.u32 %s28, 1
          %s209 = scalar_lea.sflag [#allocation3], %s208
          %s210 = sand.u32 %s28, 1
          %s211 = smul.addr %s210, 16
          %s212 = scalar_lea.vmem [#allocation2], %s211
          %s213 = smul.u32 2, %s18
          %s215 = ssub.s32 256, 256
          %216 = vsyncadd %s209, %s215
          %s217 = smul.addr %s213, 128
          %s218 = scalar_lea.hbm %s0, %s217
          %s219 = sshll.u32 %s212, 4
          %s220 = int_to_ptr.vmem [resolvable:$true] %s219
          %225 = dma.hbm_to_vmem [thread:$0]  %s218, 256, %s220, %s209, 128, 128, 8
        $region36: #{tpu_custom_call.1} parent=31 // pred_fallthru
          _
      $region32: #{tpu_custom_call.1} parent=5 // pred_fallthru
        _
      %p226 = scmp.le.s32.totalorder 1, %s18
      %p227 = scmp.lt.s32.totalorder %s18, 3
      %p228 = pnand %p226, %p227
      %p229 = pneg %p228
      // Predicated region
      $region37: #{tpu_custom_call.1} parent=5 // pred_check
        _
      $region38: #{tpu_custom_call.1} parent=5 // pred_check_branch
        %231 = sbr.rel (%p228) target = $region40
      $region39: #{tpu_custom_call.1} parent=5 // pred_region
        %s232 = ssub.s32 %s18, 1
        %s233 = sand.u32 %s31, 1
        %s234 = scalar_lea.sflag [#allocation3], %s233
        %s235 = sand.u32 %s31, 1
        %s236 = smul.addr %s235, 16
        %s237 = scalar_lea.vmem [#allocation2], %s236
        // Predicated region
        $region41: #{tpu_custom_call.1} parent=39 // pred_check
          %p238 = pneg %p44
        $region42: #{tpu_custom_call.1} parent=39 // pred_check_branch
          %240 = sbr.rel (%p238) target = $region44
        $region43: #{tpu_custom_call.1} parent=39 // pred_region
          %241 = dma.done %s234, 256
        $region44: #{tpu_custom_call.1} parent=39 // pred_fallthru
          _
        // Predicated region
        $region45: #{tpu_custom_call.1} parent=39 // pred_check
          %p242 = pneg %p65
        $region46: #{tpu_custom_call.1} parent=39 // pred_check_branch
          %244 = sbr.rel (%p242) target = $region48
        $region47: #{tpu_custom_call.1} parent=39 // pred_region
          %245 = dma.done [#allocation6], 1024
        $region48: #{tpu_custom_call.1} parent=39 // pred_fallthru
          _
        // Predicated region
        $region49: #{tpu_custom_call.1} parent=39 // pred_check
          %p246 = pneg %p107
        $region50: #{tpu_custom_call.1} parent=39 // pred_check_branch
          %248 = sbr.rel (%p246) target = $region52
        $region51: #{tpu_custom_call.1} parent=39 // pred_region
          %249 = dma.done [#allocation6], 4096
        $region52: #{tpu_custom_call.1} parent=39 // pred_fallthru
          _
        %s250 = sand.u32 %s31, 1
        %s251 = scalar_lea.sflag [#allocation3], %s250
        %s252 = sand.u32 %s31, 1
        %s253 = smul.addr %s252, 16
        %s254 = scalar_lea.vmem [#allocation2], %s253
        %p255 = pneg %p44
        %p256 = pneg %p41
        %p257 = pneg %p65
        %p258 = pneg %p62
        %p259 = pneg %p86
        %p260 = pneg %p83
        %p261 = pneg %p107
        %p262 = pneg %p104
        %p263 = pneg %p128
        %p264 = pneg %p125
        %p265 = pneg %p154
        %p266 = pneg %p151
        %s267 = sand.u32 %s141, 1
        %s268 = scalar_lea.sflag [#allocation4], %s267
        %s269 = sand.u32 %s141, 1
        %s270 = smul.addr %s269, 32
        %s271 = scalar_lea.vmem [#allocation8], %s270
        %s272 = smul.u32 2, %s23
        %s273 = smul.u32 2, %s23
        %v275 = vld [vmem:[%s237] sm:$0xff]
        %v276 = vld [vmem:[%s237 + $0x8] sm:$0xff]
        %vm277 = vcmask 523264
        %v278 = vsel %vm277, %v275, 0.0
        %279 = vadd.xlane.f32.xlu0 %v278
        %v280 = vpop.xlane.xlu0 %279
        %v281 = vsel %vm277, %v276, 0.0
        %282 = vadd.xlane.f32.xlu0 %v281
        %v283 = vpop.xlane.xlu0 %282
        %v284 = vrcp.pop 64.0
        %v285 = vmul.f32 %v280, %v284
        %v286 = vmul.f32 %v283, %v284
        %v287 = vsub.f32 %v275, %v285
        %v288 = vsub.f32 %v276, %v286
        %v289 = vmul.f32 %v287, %v287
        %v290 = vmul.f32 %v288, %v288
        %v291 = vsel %vm277, %v289, 0.0
        %292 = vadd.xlane.f32.xlu0 %v291
        %v293 = vpop.xlane.xlu0 %292
        %v294 = vsel %vm277, %v290, 0.0
        %295 = vadd.xlane.f32.xlu0 %v294
        %v296 = vpop.xlane.xlu0 %295
        %v297 = vmul.f32 %v293, %v284
        %v298 = vmul.f32 %v296, %v284
        %v299 = vadd.f32 %v297, 1e-05
        %v300 = vadd.f32 %v298, 1e-05
        %v301 = vrsqrt.pop %v299
        %v302 = vrsqrt.pop %v300
        %v303 = vmul.f32 %v287, %v301
        %v304 = vmul.f32 %v288, %v302
        %v305 = vpack.c.bf16 %v304, %v303
        %v306 = vld [vmem:[#allocation5] sm:$0xff]
        %v307 = vld [vmem:[#allocation5 + $0x8] sm:$0xff]
        %v308 = vld [vmem:[#allocation5 + $0x10] sm:$0xff]
        %v309 = vld [vmem:[#allocation5 + $0x18] sm:$0xff]
        %v310 = vld [vmem:[#allocation5 + $0x20] sm:$0xff]
        %v311 = vld [vmem:[#allocation5 + $0x28] sm:$0xff]
        %v312 = vld [vmem:[#allocation5 + $0x30] sm:$0xff]
        %v313 = vld [vmem:[#allocation5 + $0x38] sm:$0xff]
        %v314 = vld [vmem:[%s2] sm:$0x3]
        %v316 = vlaneseq
        %v317 = vshrl.u32 %v316, 7
        %v318 = vsub.s32 0, %v317
        %v319 = vrot.slane %v314, %v318
        %v320 = vlaneseq
        %v321 = vshrl.u32 %v320, 7
        %v322 = vsub.s32 1, %v321
        %v323 = vrot.slane %v314, %v322
        %v334 = vunpack.c.l.b16 %v306
        %v335 = vunpack.c.h.b16 %v306
        %v336 = vunpack.c.l.b16 %v307
        %v337 = vunpack.c.h.b16 %v307
        %v338 = vunpack.c.l.b16 %v308
        %v339 = vunpack.c.h.b16 %v308
        %v340 = vunpack.c.l.b16 %v309
        %v341 = vunpack.c.h.b16 %v309
        %v342 = vunpack.c.l.b16 %v310
        %v343 = vunpack.c.h.b16 %v310
        %v344 = vunpack.c.l.b16 %v311
        %v345 = vunpack.c.h.b16 %v311
        %v346 = vunpack.c.l.b16 %v312
        %v347 = vunpack.c.h.b16 %v312
        %v348 = vunpack.c.l.b16 %v313
        %v349 = vunpack.c.h.b16 %v313
        %v350 = vpack.c.b16 %v336, %v334
        %v351 = vpack.c.b16 %v337, %v335
        %v352 = vpack.c.b16 %v340, %v338
        %v353 = vpack.c.b16 %v341, %v339
        %v354 = vpack.c.b16 %v344, %v342
        %v355 = vpack.c.b16 %v345, %v343
        %v356 = vpack.c.b16 %v348, %v346
        %v357 = vpack.c.b16 %v349, %v347
        %v367 = vsel %vm277, %v305, 0
        %369 = vmatprep.subr.bf16.mxu0 0
        %370 = vmatpush1.bf16.msra.mxu0 0
        %371 = vmatprep.subr.bf16.mxu0 0
        %372 = vmatpush1.bf16.msra.mxu0 0
        %373 = vmatprep.subr.bf16.mxu0 0
        %374 = vmatpush1.bf16.msra.mxu0 0
        %375 = vmatprep.subr.bf16.mxu0 0
        %376 = vmatpush1.bf16.msra.mxu0 0
        %377 = vmatprep.subr.bf16.mxu0 %v357
        %378 = vmatpush1.bf16.msra.mxu0 %v356
        %379 = vmatprep.subr.bf16.mxu0 %v355
        %380 = vmatpush1.bf16.msra.mxu0 %v354
        %381 = vmatprep.subr.bf16.mxu0 %v353
        %382 = vmatpush1.bf16.msra.mxu0 %v352
        %383 = vmatprep.subr.bf16.mxu0 %v351
        %384 = vmatpush1.bf16.msra.mxu0 %v350
        %385 = vmatprep.subr.bf16.mxu0 0
        %386 = vmatpush2.bf16.msra.mxu0 0
        %387 = vmatprep.subr.bf16.mxu0 0
        %388 = vmatpush2.bf16.msra.mxu0 0
        %389 = vmatprep.subr.bf16.mxu0 0
        %390 = vmatpush2.bf16.msra.mxu0 0
        %391 = vmatprep.subr.bf16.mxu0 0
        %392 = vmatpush2.bf16.msra.mxu0 0
        %393 = vmatprep.subr.bf16.mxu0 0
        %394 = vmatpush2.bf16.msra.mxu0 0
        %395 = vmatprep.subr.bf16.mxu0 0
        %396 = vmatpush2.bf16.msra.mxu0 0
        %397 = vmatprep.subr.bf16.mxu0 0
        %398 = vmatpush2.bf16.msra.mxu0 0
        %399 = vmatprep.subr.bf16.mxu0 0
        %400 = vmatpush2.bf16.msra.mxu0 0
        %401 = vmatprep.mubr.bf16.mxu0 0
        %402 = vmatmul.mubr.bf16.gmra.mxu0 %v367
        %v403 = vpop.f32.mrf.mxu0
        %v404 = vadd.f32 %v319, %v403
        %v405 = vpop.f32.mrf.mxu0
        %v406 = vadd.f32 %v323, %v405
        %v407 = vpop.f32.mrf.mxu0
        %v408 = vadd.f32 %v319, %v407
        %v409 = vpop.f32.mrf.mxu0
        %v410 = vadd.f32 %v323, %v409
        %411 = vdwg.mxu0
        %v412 = vxor.u32 %v404, 2147483648
        %v413 = vxor.u32 %v406, 2147483648
        %v414 = vxor.u32 %v408, 2147483648
        %v415 = vxor.u32 %v410, 2147483648
        %v416 = vmul.f32 %v412, 1.442695
        %v417 = vpow.pop %v416
        %v418 = vmul.f32 %v413, 1.442695
        %v419 = vpow.pop %v418
        %v420 = vmul.f32 %v414, 1.442695
        %v421 = vpow.pop %v420
        %v422 = vmul.f32 %v415, 1.442695
        %v423 = vpow.pop %v422
        %v424 = vadd.f32 %v417, 1.0
        %v425 = vadd.f32 %v419, 1.0
        %v426 = vadd.f32 %v421, 1.0
        %v427 = vadd.f32 %v423, 1.0
        %v428 = vrcp.pop %v424
        %v429 = vmul.f32 1.0, %v428
        %v430 = vrcp.pop %v425
        %v431 = vmul.f32 1.0, %v430
        %v432 = vrcp.pop %v426
        %v433 = vmul.f32 1.0, %v432
        %v434 = vrcp.pop %v427
        %v435 = vmul.f32 1.0, %v434
        %v436 = vmul.f32 %v404, %v429
        %v437 = vmul.f32 %v406, %v431
        %v438 = vmul.f32 %v408, %v433
        %v439 = vmul.f32 %v410, %v435
        %v440 = vpack.c.bf16 %v438, %v436
        %v441 = vpack.c.bf16 %v439, %v437
        %v442 = vld [vmem:[#allocation7] sm:$0xff]
        %v443 = vld [vmem:[#allocation7 + $0x8] sm:$0xff]
        %v444 = vld [vmem:[#allocation7 + $0x10] sm:$0xff]
        %v445 = vld [vmem:[#allocation7 + $0x18] sm:$0xff]
        %v446 = vld [vmem:[#allocation7 + $0x20] sm:$0xff]
        %v447 = vld [vmem:[#allocation7 + $0x28] sm:$0xff]
        %v448 = vld [vmem:[#allocation7 + $0x30] sm:$0xff]
        %v449 = vld [vmem:[#allocation7 + $0x38] sm:$0xff]
        %v450 = vld [vmem:[#allocation7 + $0x40] sm:$0xff]
        %v451 = vld [vmem:[#allocation7 + $0x48] sm:$0xff]
        %v452 = vld [vmem:[#allocation7 + $0x50] sm:$0xff]
        %v453 = vld [vmem:[#allocation7 + $0x58] sm:$0xff]
        %v454 = vld [vmem:[#allocation7 + $0x60] sm:$0xff]
        %v455 = vld [vmem:[#allocation7 + $0x68] sm:$0xff]
        %v456 = vld [vmem:[#allocation7 + $0x70] sm:$0xff]
        %v457 = vld [vmem:[#allocation7 + $0x78] sm:$0xff]
        %v458 = vld [vmem:[#allocation7 + $0x80] sm:$0xff]
        %v459 = vld [vmem:[#allocation7 + $0x88] sm:$0xff]
        %v460 = vld [vmem:[#allocation7 + $0x90] sm:$0xff]
        %v461 = vld [vmem:[#allocation7 + $0x98] sm:$0xff]
        %v462 = vld [vmem:[#allocation7 + $0xa0] sm:$0xff]
        %v463 = vld [vmem:[#allocation7 + $0xa8] sm:$0xff]
        %v464 = vld [vmem:[#allocation7 + $0xb0] sm:$0xff]
        %v465 = vld [vmem:[#allocation7 + $0xb8] sm:$0xff]
        %v466 = vld [vmem:[#allocation7 + $0xc0] sm:$0xff]
        %v467 = vld [vmem:[#allocation7 + $0xc8] sm:$0xff]
        %v468 = vld [vmem:[#allocation7 + $0xd0] sm:$0xff]
        %v469 = vld [vmem:[#allocation7 + $0xd8] sm:$0xff]
        %v470 = vld [vmem:[#allocation7 + $0xe0] sm:$0xff]
        %v471 = vld [vmem:[#allocation7 + $0xe8] sm:$0xff]
        %v472 = vld [vmem:[#allocation7 + $0xf0] sm:$0xff]
        %v473 = vld [vmem:[#allocation7 + $0xf8] sm:$0xff]
        %v474 = vld [vmem:[%s4] sm:$0x3]
        %v476 = vlaneseq
        %v477 = vshrl.u32 %v476, 7
        %v478 = vsub.s32 0, %v477
        %v479 = vrot.slane %v474, %v478
        %v480 = vlaneseq
        %v481 = vshrl.u32 %v480, 7
        %v482 = vsub.s32 1, %v481
        %v483 = vrot.slane %v474, %v482
        %v518 = vunpack.c.l.b16 %v442
        %v519 = vunpack.c.h.b16 %v442
        %v520 = vunpack.c.l.b16 %v443
        %v521 = vunpack.c.h.b16 %v443
        %v522 = vunpack.c.l.b16 %v444
        %v523 = vunpack.c.h.b16 %v444
        %v524 = vunpack.c.l.b16 %v445
        %v525 = vunpack.c.h.b16 %v445
        %v526 = vunpack.c.l.b16 %v446
        %v527 = vunpack.c.h.b16 %v446
        %v528 = vunpack.c.l.b16 %v447
        %v529 = vunpack.c.h.b16 %v447
        %v530 = vunpack.c.l.b16 %v448
        %v531 = vunpack.c.h.b16 %v448
        %v532 = vunpack.c.l.b16 %v449
        %v533 = vunpack.c.h.b16 %v449
        %v534 = vunpack.c.l.b16 %v450
        %v535 = vunpack.c.h.b16 %v450
        %v536 = vunpack.c.l.b16 %v451
        %v537 = vunpack.c.h.b16 %v451
        %v538 = vunpack.c.l.b16 %v452
        %v539 = vunpack.c.h.b16 %v452
        %v540 = vunpack.c.l.b16 %v453
        %v541 = vunpack.c.h.b16 %v453
        %v542 = vunpack.c.l.b16 %v454
        %v543 = vunpack.c.h.b16 %v454
        %v544 = vunpack.c.l.b16 %v455
        %v545 = vunpack.c.h.b16 %v455
        %v546 = vunpack.c.l.b16 %v456
        %v547 = vunpack.c.h.b16 %v456
        %v548 = vunpack.c.l.b16 %v457
        %v549 = vunpack.c.h.b16 %v457
        %v550 = vunpack.c.l.b16 %v458
        %v551 = vunpack.c.h.b16 %v458
        %v552 = vunpack.c.l.b16 %v459
        %v553 = vunpack.c.h.b16 %v459
        %v554 = vunpack.c.l.b16 %v460
        %v555 = vunpack.c.h.b16 %v460
        %v556 = vunpack.c.l.b16 %v461
        %v557 = vunpack.c.h.b16 %v461
        %v558 = vunpack.c.l.b16 %v462
        %v559 = vunpack.c.h.b16 %v462
        %v560 = vunpack.c.l.b16 %v463
        %v561 = vunpack.c.h.b16 %v463
        %v562 = vunpack.c.l.b16 %v464
        %v563 = vunpack.c.h.b16 %v464
        %v564 = vunpack.c.l.b16 %v465
        %v565 = vunpack.c.h.b16 %v465
        %v566 = vunpack.c.l.b16 %v466
        %v567 = vunpack.c.h.b16 %v466
        %v568 = vunpack.c.l.b16 %v467
        %v569 = vunpack.c.h.b16 %v467
        %v570 = vunpack.c.l.b16 %v468
        %v571 = vunpack.c.h.b16 %v468
        %v572 = vunpack.c.l.b16 %v469
        %v573 = vunpack.c.h.b16 %v469
        %v574 = vunpack.c.l.b16 %v470
        %v575 = vunpack.c.h.b16 %v470
        %v576 = vunpack.c.l.b16 %v471
        %v577 = vunpack.c.h.b16 %v471
        %v578 = vunpack.c.l.b16 %v472
        %v579 = vunpack.c.h.b16 %v472
        %v580 = vunpack.c.l.b16 %v473
        %v581 = vunpack.c.h.b16 %v473
        %v582 = vpack.c.b16 %v520, %v518
        %v583 = vpack.c.b16 %v521, %v519
        %v584 = vpack.c.b16 %v524, %v522
        %v585 = vpack.c.b16 %v525, %v523
        %v586 = vpack.c.b16 %v528, %v526
        %v587 = vpack.c.b16 %v529, %v527
        %v588 = vpack.c.b16 %v532, %v530
        %v589 = vpack.c.b16 %v533, %v531
        %v590 = vpack.c.b16 %v536, %v534
        %v591 = vpack.c.b16 %v537, %v535
        %v592 = vpack.c.b16 %v540, %v538
        %v593 = vpack.c.b16 %v541, %v539
        %v594 = vpack.c.b16 %v544, %v542
        %v595 = vpack.c.b16 %v545, %v543
        %v596 = vpack.c.b16 %v548, %v546
        %v597 = vpack.c.b16 %v549, %v547
        %v598 = vpack.c.b16 %v552, %v550
        %v599 = vpack.c.b16 %v553, %v551
        %v600 = vpack.c.b16 %v556, %v554
        %v601 = vpack.c.b16 %v557, %v555
        %v602 = vpack.c.b16 %v560, %v558
        %v603 = vpack.c.b16 %v561, %v559
        %v604 = vpack.c.b16 %v564, %v562
        %v605 = vpack.c.b16 %v565, %v563
        %v606 = vpack.c.b16 %v568, %v566
        %v607 = vpack.c.b16 %v569, %v567
        %v608 = vpack.c.b16 %v572, %v570
        %v609 = vpack.c.b16 %v573, %v571
        %v610 = vpack.c.b16 %v576, %v574
        %v611 = vpack.c.b16 %v577, %v575
        %v612 = vpack.c.b16 %v580, %v578
        %v613 = vpack.c.b16 %v581, %v579
        %646 = vmatprep.subr.bf16.mxu0 %v597
        %647 = vmatpush1.bf16.msra.mxu0 %v596
        %648 = vmatprep.subr.bf16.mxu0 %v595
        %649 = vmatpush1.bf16.msra.mxu0 %v594
        %650 = vmatprep.subr.bf16.mxu0 %v593
        %651 = vmatpush1.bf16.msra.mxu0 %v592
        %652 = vmatprep.subr.bf16.mxu0 %v591
        %653 = vmatpush1.bf16.msra.mxu0 %v590
        %654 = vmatprep.subr.bf16.mxu0 %v589
        %655 = vmatpush1.bf16.msra.mxu0 %v588
        %656 = vmatprep.subr.bf16.mxu0 %v587
        %657 = vmatpush1.bf16.msra.mxu0 %v586
        %658 = vmatprep.subr.bf16.mxu0 %v585
        %659 = vmatpush1.bf16.msra.mxu0 %v584
        %660 = vmatprep.subr.bf16.mxu0 %v583
        %661 = vmatpush1.bf16.msra.mxu0 %v582
        %662 = vmatprep.subr.bf16.mxu0 %v613
        %663 = vmatpush2.bf16.msra.mxu0 %v612
        %664 = vmatprep.subr.bf16.mxu0 %v611
        %665 = vmatpush2.bf16.msra.mxu0 %v610
        %666 = vmatprep.subr.bf16.mxu0 %v609
        %667 = vmatpush2.bf16.msra.mxu0 %v608
        %668 = vmatprep.subr.bf16.mxu0 %v607
        %669 = vmatpush2.bf16.msra.mxu0 %v606
        %670 = vmatprep.subr.bf16.mxu0 %v605
        %671 = vmatpush2.bf16.msra.mxu0 %v604
        %672 = vmatprep.subr.bf16.mxu0 %v603
        %673 = vmatpush2.bf16.msra.mxu0 %v602
        %674 = vmatprep.subr.bf16.mxu0 %v601
        %675 = vmatpush2.bf16.msra.mxu0 %v600
        %676 = vmatprep.subr.bf16.mxu0 %v599
        %677 = vmatpush2.bf16.msra.mxu0 %v598
        %678 = vmatprep.mubr.bf16.mxu0 %v441
        %679 = vmatmul.mubr.bf16.gmra.mxu0 %v440
        %v680 = vpop.f32.mrf.mxu0
        %v681 = vadd.f32 %v479, %v680
        %v682 = vpop.f32.mrf.mxu0
        %v683 = vadd.f32 %v483, %v682
        %v684 = vpop.f32.mrf.mxu0
        %v685 = vadd.f32 %v479, %v684
        %v686 = vpop.f32.mrf.mxu0
        %v687 = vadd.f32 %v483, %v686
        %688 = vdwg.mxu0
        %689 = vst [vmem:[%s271] sm:$0xff] %v681
        %690 = vst [vmem:[%s271 + $0x8] sm:$0xff] %v683
        %691 = vst [vmem:[%s271 + $0x10] sm:$0xff] %v685
        %692 = vst [vmem:[%s271 + $0x18] sm:$0xff] %v687
        %s693 = sand.u32 %s141, 1
        %s694 = scalar_lea.sflag [#allocation4], %s693
        %s695 = sand.u32 %s141, 1
        %s696 = smul.addr %s695, 32
        %s697 = scalar_lea.vmem [#allocation8], %s696
        // Predicated region
        $region53: #{tpu_custom_call.1} parent=39 // pred_check
          %p698 = pneg %p151
        $region54: #{tpu_custom_call.1} parent=39 // pred_check_branch
          %700 = sbr.rel (%p698) target = $region56
        $region55: #{tpu_custom_call.1} parent=39 // pred_region
          %s701 = smul.u32 2, %s23
          %s703 = ssub.s32 512, 512
          %704 = vsyncadd %s694, %s703
          %s705 = smul.addr %s701, 2
          %s706 = smul.addr %s705, 128
          %s707 = scalar_lea.hbm %s5, %s706
          %s708 = sshll.u32 %s697, 4
          %s709 = int_to_ptr.vmem [resolvable:$true] %s708
          %714 = dma.vmem_to_hbm [thread:$0]  %s709, 512, %s707, %s694, 256, 256, 16
        $region56: #{tpu_custom_call.1} parent=39 // pred_fallthru
          _
      $region40: #{tpu_custom_call.1} parent=5 // pred_fallthru
        _
      %p715 = scmp.le.s32.totalorder 2, %s18
      // Predicated region
      $region57: #{tpu_custom_call.1} parent=5 // pred_check
        %p716 = pneg %p715
      $region58: #{tpu_custom_call.1} parent=5 // pred_check_branch
        %718 = sbr.rel (%p716) target = $region60
      $region59: #{tpu_custom_call.1} parent=5 // pred_region
        %s719 = ssub.s32 %s18, 2
        // Predicated region
        $region61: #{tpu_custom_call.1} parent=59 // pred_check
          %p720 = pneg %p157
        $region62: #{tpu_custom_call.1} parent=59 // pred_check_branch
          %722 = sbr.rel (%p720) target = $region64
        $region63: #{tpu_custom_call.1} parent=59 // pred_region
          %s723 = sand.u32 %s142, 1
          %s724 = scalar_lea.sflag [#allocation4], %s723
          %s725 = sand.u32 %s142, 1
          %s726 = smul.addr %s725, 32
          %s727 = scalar_lea.vmem [#allocation8], %s726
          %728 = dma.done %s724, 512
        $region64: #{tpu_custom_call.1} parent=59 // pred_fallthru
          _
      $region60: #{tpu_custom_call.1} parent=5 // pred_fallthru
        _
    $region6: #{tpu_custom_call.1} parent=1 // loop_footer
      %s22 = sadd.s32 1, %s18
    $region7: #{tpu_custom_call.1} parent=1 // loop_footer_branch
      %17 = sbr.rel target = $region3
    $region8: #{tpu_custom_call.1} parent=1 // loop_exit
      _
    %729 = vsyncpa [#allocation3], 1
    %s730 = scalar_lea.sflag [#allocation3], 1
    %731 = vsyncpa %s730, 1
    %732 = vsyncpa [#allocation6], 1
    %733 = vsyncpa [#allocation4], 1
    %s734 = scalar_lea.sflag [#allocation4], 1
    %735 = vsyncpa %s734, 1

</llo_original>
